<compile_context>
chip_gen: v6e
topology: v6e:2x2x1
jax: 0.10.0
libtpu: 0.0.40
codegen_flags: <defaults>
</compile_context>

<pallas_src>
import functools

import jax
import jax.numpy as jnp
from jax.experimental import pallas as pl
from jax.experimental.pallas import tpu as pltpu


# --------------------------------------------------------------------------
# small helpers
# --------------------------------------------------------------------------
def _round_up(x, m):
    return ((x + m - 1) // m) * m


def _row_tile(M, cap=512, split_threshold=192):
    """Row-tile size: single full block for small M, otherwise >=2 blocks
    (keeps both v7x TensorCores busy) capped at 512 rows."""
    if M <= split_threshold:
        return M
    return min(cap, _round_up((M + 1) // 2, 8))


def _ln(x, g, b, eps):
    # layernorm over the last (lane) axis, f32 math
    mu = jnp.mean(x, axis=-1, keepdims=True)
    xc = x - mu
    var = jnp.mean(xc * xc, axis=-1, keepdims=True)
    return xc * jax.lax.rsqrt(var + eps) * g + b


def _gelu_exact(x):
    # exact (erf) GELU via Abramowitz-Stegun 7.1.26 (|err| < 1.5e-7), built
    # only from primitives guaranteed to lower in Mosaic (exp/mul/add/where).
    z = x * 0.7071067811865476
    az = jnp.abs(z)
    t = 1.0 / (1.0 + 0.3275911 * az)
    poly = t * (0.254829592 + t * (-0.284496736 + t * (1.421413741
               + t * (-1.453152027 + t * 1.061405429))))
    erf_abs = 1.0 - poly * jnp.exp(-az * az)
    erf = jnp.where(z >= 0, erf_abs, -erf_abs)
    return 0.5 * x * (1.0 + erf)


# --------------------------------------------------------------------------
# Pallas kernels
# --------------------------------------------------------------------------
def _mm_bias_kernel(a_ref, w_ref, b_ref, o_ref):
    # bf16 operands in HBM, f32 accumulate, fused bias
    y = jnp.dot(a_ref[...], w_ref[...], preferred_element_type=jnp.float32)
    o_ref[...] = (y + b_ref[...]).astype(o_ref.dtype)


def _mm_bias_res_kernel(a_ref, w_ref, b_ref, r_ref, o_ref):
    # matmul + bias + residual add fused in the epilogue
    y = jnp.dot(a_ref[...], w_ref[...], preferred_element_type=jnp.float32)
    o_ref[...] = (y + b_ref[...] + r_ref[...].astype(jnp.float32)).astype(o_ref.dtype)


def _ln_mm_bias_kernel(x_ref, g_ref, bln_ref, w_ref, b_ref, o_ref, *, eps):
    # layernorm fused into the consumer matmul (norm1 -> qkv projection)
    xn = _ln(x_ref[...].astype(jnp.float32), g_ref[...], bln_ref[...], eps)
    y = jnp.dot(xn.astype(jnp.bfloat16), w_ref[...],
                preferred_element_type=jnp.float32)
    o_ref[...] = (y + b_ref[...]).astype(o_ref.dtype)


def _ln_mlp_kernel(x_ref, g_ref, bln_ref, w1_ref, b1_ref, w2_ref, b2_ref,
                   o_ref, *, eps):
    # norm2 -> mlp_w1 -> GELU -> mlp_w2 + identity residual, all in one kernel
    x = x_ref[...].astype(jnp.float32)
    xn = _ln(x, g_ref[...], bln_ref[...], eps).astype(jnp.bfloat16)
    h = jnp.dot(xn, w1_ref[...], preferred_element_type=jnp.float32) + b1_ref[...]
    h = _gelu_exact(h)
    y = jnp.dot(h.astype(jnp.bfloat16), w2_ref[...],
                preferred_element_type=jnp.float32) + b2_ref[...]
    o_ref[...] = (y + x).astype(o_ref.dtype)


def _ln_mlp_proj_kernel(x_ref, g_ref, bln_ref, w1_ref, b1_ref, w2_ref, b2_ref,
                        pw_ref, pb_ref, o_ref, *, eps):
    # norm2 -> mlp + dim-change projection residual (proj(LN(x)) + mlp(LN(x)))
    x = x_ref[...].astype(jnp.float32)
    xn = _ln(x, g_ref[...], bln_ref[...], eps).astype(jnp.bfloat16)
    h = jnp.dot(xn, w1_ref[...], preferred_element_type=jnp.float32) + b1_ref[...]
    h = _gelu_exact(h)
    y = jnp.dot(h.astype(jnp.bfloat16), w2_ref[...],
                preferred_element_type=jnp.float32) + b2_ref[...]
    res = jnp.dot(xn, pw_ref[...], preferred_element_type=jnp.float32) + pb_ref[...]
    o_ref[...] = (y + res).astype(o_ref.dtype)


def _attention_kernel(q_ref, k_ref, v_ref, gq_ref, bq_ref, gk_ref, bk_ref,
                      gv_ref, bv_ref, o_ref, *, scale, ln_q, ln_k, ln_v, eps):
    # batched over (batch*head); per-head post-pool LayerNorms fused here.
    q = q_ref[...].astype(jnp.float32)
    if ln_q:
        q = _ln(q, gq_ref[...], bq_ref[...], eps)
    q = (q * scale).astype(jnp.bfloat16)          # pre-scale q (Nq*d, not Nq*Nk)
    k = k_ref[...].astype(jnp.float32)
    if ln_k:
        k = _ln(k, gk_ref[...], bk_ref[...], eps)
    k = k.astype(jnp.bfloat16)
    v = v_ref[...].astype(jnp.float32)
    if ln_v:
        v = _ln(v, gv_ref[...], bv_ref[...], eps)
    v = v.astype(jnp.bfloat16)

    s = jnp.einsum("bqd,bkd->bqk", q, k, preferred_element_type=jnp.float32)
    s = s - jnp.max(s, axis=-1, keepdims=True)
    p = jnp.exp(s.astype(jnp.bfloat16))           # bf16 EUP exp (v6e/v7x)
    l = jnp.sum(p, axis=-1, keepdims=True, dtype=jnp.float32)
    pv = jnp.einsum("bqk,bkd->bqd", p, v, preferred_element_type=jnp.float32)
    o_ref[...] = (pv * pl.reciprocal(l, approx=True)).astype(o_ref.dtype)


def _pool3d_conv_kernel(x_ref, w_ref, o_ref, *, kT, kH, kW):
    # shifted-add depthwise 3D conv (stride 1) on the un-expanded channel-last
    # tensor — no im2col materialization, pure VPU adds on (.., C) lane tiles.
    x = x_ref[0].astype(jnp.float32)              # (Tp, Hp, Wp, C)
    Tp, Hp, Wp, C = x.shape
    To, Ho, Wo = Tp - kT + 1, Hp - kH + 1, Wp - kW + 1
    acc = None
    idx = 0
    for dt in range(kT):
        for dh in range(kH):
            for dw in range(kW):
                tap = x[dt:dt + To, dh:dh + Ho, dw:dw + Wo, :]
                tap = tap * w_ref[idx].astype(jnp.float32)
                acc = tap if acc is None else acc + tap
                idx += 1
    o_ref[0] = acc.astype(o_ref.dtype)


def _pool3d_max_kernel(x_ref, o_ref, *, kT, kH, kW):
    x = x_ref[0].astype(jnp.float32)              # (Tp, Hp, Wp, C)
    Tp, Hp, Wp, C = x.shape
    To, Ho, Wo = Tp - kT + 1, Hp - kH + 1, Wp - kW + 1
    acc = None
    for dt in range(kT):
        for dh in range(kH):
            for dw in range(kW):
                tap = x[dt:dt + To, dh:dh + Ho, dw:dw + Wo, :]
                acc = tap if acc is None else jnp.maximum(acc, tap)
    o_ref[0] = acc.astype(o_ref.dtype)


# --------------------------------------------------------------------------
# Pallas wrappers
# --------------------------------------------------------------------------
def matmul_fused(a, w, b=None, residual=None, cap=512):
    """a:(M,K) @ w:(K,N) + b (+ residual). bf16 in HBM, full-K/full-N blocks."""
    M, K = a.shape
    K2, N = w.shape
    assert K == K2
    a = a.astype(jnp.bfloat16)
    w = w.astype(jnp.bfloat16)
    if b is None:
        b = jnp.zeros((N,), jnp.float32)
    b2 = b.astype(jnp.float32).reshape(1, N)

    tm = _row_tile(M, cap)
    Mp = _round_up(M, tm)
    if Mp != M:
        a = jnp.pad(a, ((0, Mp - M), (0, 0)))
        if residual is not None:
            residual = jnp.pad(residual, ((0, Mp - M), (0, 0)))

    in_specs = [pl.BlockSpec((tm, K), lambda i: (i, 0)),
                pl.BlockSpec((K, N), lambda i: (0, 0)),
                pl.BlockSpec((1, N), lambda i: (0, 0))]
    args = [a, w, b2]
    if residual is not None:
        in_specs.append(pl.BlockSpec((tm, N), lambda i: (i, 0)))
        args.append(residual.astype(jnp.bfloat16))
        kernel = _mm_bias_res_kernel
    else:
        kernel = _mm_bias_kernel

    out = pl.pallas_call(
        kernel,
        out_shape=jax.ShapeDtypeStruct((Mp, N), jnp.bfloat16),
        grid_spec=pltpu.PrefetchScalarGridSpec(
            num_scalar_prefetch=0,
            grid=(Mp // tm,),
            in_specs=in_specs,
            out_specs=pl.BlockSpec((tm, N), lambda i: (i, 0))),
        compiler_params=pltpu.CompilerParams(
            dimension_semantics=("parallel",)),
    )(*args)
    return out[:M] if Mp != M else out


def linear(x, w, b=None, residual=None):
    shp = x.shape
    n_out = w.shape[1]
    x2 = x.reshape(-1, shp[-1])
    r2 = residual.reshape(-1, n_out) if residual is not None else None
    y = matmul_fused(x2, w, b, r2)
    return y.reshape(shp[:-1] + (n_out,))


def ln_linear(x, gamma, beta, w, b, eps=1e-6, cap=512):
    """LayerNorm fused into a matmul+bias (used for norm1 -> qkv projection)."""
    shp = x.shape
    C = shp[-1]
    N = w.shape[1]
    x2 = x.reshape(-1, C).astype(jnp.bfloat16)
    M = x2.shape[0]
    tm = _row_tile(M, cap)
    Mp = _round_up(M, tm)
    if Mp != M:
        x2 = jnp.pad(x2, ((0, Mp - M), (0, 0)))
    out = pl.pallas_call(
        functools.partial(_ln_mm_bias_kernel, eps=eps),
        out_shape=jax.ShapeDtypeStruct((Mp, N), jnp.bfloat16),
        grid_spec=pltpu.PrefetchScalarGridSpec(
            num_scalar_prefetch=0,
            grid=(Mp // tm,),
            in_specs=[pl.BlockSpec((tm, C), lambda i: (i, 0)),
                      pl.BlockSpec((1, C), lambda i: (0, 0)),
                      pl.BlockSpec((1, C), lambda i: (0, 0)),
                      pl.BlockSpec((C, N), lambda i: (0, 0)),
                      pl.BlockSpec((1, N), lambda i: (0, 0))],
            out_specs=pl.BlockSpec((tm, N), lambda i: (i, 0))),
        compiler_params=pltpu.CompilerParams(
            dimension_semantics=("parallel",)),
    )(x2,
      gamma.astype(jnp.float32).reshape(1, C),
      beta.astype(jnp.float32).reshape(1, C),
      w.astype(jnp.bfloat16),
      b.astype(jnp.float32).reshape(1, N))
    out = out[:M] if Mp != M else out
    return out.reshape(shp[:-1] + (N,))


def ln_mlp(x, gamma, beta, w1, b1, w2, b2, proj_w=None, proj_b=None,
           eps=1e-6, cap=512):
    """norm2 + MLP (+ optional dim-change proj residual) fused in one kernel."""
    shp = x.shape
    C = shp[-1]
    hidden = w1.shape[1]
    n_out = w2.shape[1]
    x2 = x.reshape(-1, C).astype(jnp.bfloat16)
    M = x2.shape[0]
    tm = _row_tile(M, cap)
    Mp = _round_up(M, tm)
    if Mp != M:
        x2 = jnp.pad(x2, ((0, Mp - M), (0, 0)))

    in_specs = [pl.BlockSpec((tm, C), lambda i: (i, 0)),
                pl.BlockSpec((1, C), lambda i: (0, 0)),
                pl.BlockSpec((1, C), lambda i: (0, 0)),
                pl.BlockSpec((C, hidden), lambda i: (0, 0)),
                pl.BlockSpec((1, hidden), lambda i: (0, 0)),
                pl.BlockSpec((hidden, n_out), lambda i: (0, 0)),
                pl.BlockSpec((1, n_out), lambda i: (0, 0))]
    args = [x2,
            gamma.astype(jnp.float32).reshape(1, C),
            beta.astype(jnp.float32).reshape(1, C),
            w1.astype(jnp.bfloat16), b1.astype(jnp.float32).reshape(1, hidden),
            w2.astype(jnp.bfloat16), b2.astype(jnp.float32).reshape(1, n_out)]
    if proj_w is not None:
        kernel = _ln_mlp_proj_kernel
        in_specs += [pl.BlockSpec((C, n_out), lambda i: (0, 0)),
                     pl.BlockSpec((1, n_out), lambda i: (0, 0))]
        args += [proj_w.astype(jnp.bfloat16),
                 proj_b.astype(jnp.float32).reshape(1, n_out)]
    else:
        assert n_out == C
        kernel = _ln_mlp_kernel

    out = pl.pallas_call(
        functools.partial(kernel, eps=eps),
        out_shape=jax.ShapeDtypeStruct((Mp, n_out), jnp.bfloat16),
        grid_spec=pltpu.PrefetchScalarGridSpec(
            num_scalar_prefetch=0,
            grid=(Mp // tm,),
            in_specs=in_specs,
            out_specs=pl.BlockSpec((tm, n_out), lambda i: (i, 0))),
        compiler_params=pltpu.CompilerParams(
            dimension_semantics=("parallel",)),
    )(*args)
    out = out[:M] if Mp != M else out
    return out.reshape(shp[:-1] + (n_out,))


def attention(q, k, v, scale, norm_q=None, norm_k=None, norm_v=None,
              eps=1e-6, bh_tile_max=8):
    """q:(BH,Nq,d), k/v:(BH,Nk,d); per-head post-pool LN fused in the prologue."""
    BH, Nq, d = q.shape
    Nk = k.shape[1]
    bh_tile = min(BH, bh_tile_max)
    BHp = _round_up(BH, bh_tile)
    if BHp != BH:
        pad = BHp - BH
        q = jnp.pad(q, ((0, pad), (0, 0), (0, 0)))
        k = jnp.pad(k, ((0, pad), (0, 0), (0, 0)))
        v = jnp.pad(v, ((0, pad), (0, 0), (0, 0)))

    ones = jnp.ones((1, 1, d), jnp.float32)
    zeros = jnp.zeros((1, 1, d), jnp.float32)

    def gb(norm):
        if norm is None:
            return ones, zeros
        return (norm["gamma"].astype(jnp.float32).reshape(1, 1, d),
                norm["beta"].astype(jnp.float32).reshape(1, 1, d))

    gq, bq = gb(norm_q)
    gk, bk = gb(norm_k)
    gv, bv = gb(norm_v)

    small = lambda i: (0, 0, 0)
    out = pl.pallas_call(
        functools.partial(_attention_kernel, scale=scale,
                          ln_q=norm_q is not None, ln_k=norm_k is not None,
                          ln_v=norm_v is not None, eps=eps),
        out_shape=jax.ShapeDtypeStruct((BHp, Nq, d), jnp.bfloat16),
        grid_spec=pltpu.PrefetchScalarGridSpec(
            num_scalar_prefetch=0,
            grid=(BHp // bh_tile,),
            in_specs=[pl.BlockSpec((bh_tile, Nq, d), lambda i: (i, 0, 0)),
                      pl.BlockSpec((bh_tile, Nk, d), lambda i: (i, 0, 0)),
                      pl.BlockSpec((bh_tile, Nk, d), lambda i: (i, 0, 0)),
                      pl.BlockSpec((1, 1, d), small), pl.BlockSpec((1, 1, d), small),
                      pl.BlockSpec((1, 1, d), small), pl.BlockSpec((1, 1, d), small),
                      pl.BlockSpec((1, 1, d), small), pl.BlockSpec((1, 1, d), small)],
            out_specs=pl.BlockSpec((bh_tile, Nq, d), lambda i: (i, 0, 0))),
        compiler_params=pltpu.CompilerParams(
            dimension_semantics=("parallel",)),
    )(q.astype(jnp.bfloat16), k.astype(jnp.bfloat16), v.astype(jnp.bfloat16),
      gq, bq, gk, bk, gv, bv)
    return out[:BH] if BHp != BH else out


def pool3d(x_cl, kernel, stride, padding, mode, weight=None):
    """Depthwise conv / max pool on a channel-last (B,T,H,W,C) tensor.

    The kernel computes the stride-1 result with 27 shifted halo adds in VMEM
    (no im2col in HBM); the strided subsample happens on the (small) output."""
    kT, kH, kW = kernel
    sT, sH, sW = stride
    pT, pH, pW = padding
    pad_val = 0.0 if mode == "conv" else float("-inf")
    xp = jnp.pad(x_cl.astype(jnp.bfloat16),
                 ((0, 0), (pT, pT), (pH, pH), (pW, pW), (0, 0)),
                 constant_values=pad_val)
    B, Tp, Hp, Wp, C = xp.shape
    To1, Ho1, Wo1 = Tp - kT + 1, Hp - kH + 1, Wp - kW + 1

    if mode == "conv":
        kern = functools.partial(_pool3d_conv_kernel, kT=kT, kH=kH, kW=kW)
        in_specs = [pl.BlockSpec((1, Tp, Hp, Wp, C), lambda b: (b, 0, 0, 0, 0)),
                    pl.BlockSpec((kT * kH * kW, C), lambda b: (0, 0))]
        args = (xp, weight.astype(jnp.bfloat16))
    else:
        kern = functools.partial(_pool3d_max_kernel, kT=kT, kH=kH, kW=kW)
        in_specs = [pl.BlockSpec((1, Tp, Hp, Wp, C), lambda b: (b, 0, 0, 0, 0))]
        args = (xp,)

    out = pl.pallas_call(
        kern,
        out_shape=jax.ShapeDtypeStruct((B, To1, Ho1, Wo1, C), jnp.bfloat16),
        grid_spec=pltpu.PrefetchScalarGridSpec(
            num_scalar_prefetch=0,
            grid=(B,),
            in_specs=in_specs,
            out_specs=pl.BlockSpec((1, To1, Ho1, Wo1, C),
                                   lambda b: (b, 0, 0, 0, 0))),
        compiler_params=pltpu.CompilerParams(
            dimension_semantics=("parallel",)),
    )(*args)
    if (sT, sH, sW) != (1, 1, 1):
        out = out[:, ::sT, ::sH, ::sW, :]
    return out


# --------------------------------------------------------------------------
# Glue: one-time im2col for patch_embed (plain JAX data movement)
# --------------------------------------------------------------------------
def _extract_patches_3d(x, kernel, stride, padding, pad_value=0.0):
    # x: (B, C, T, H, W) -> patches (B, C, K, To, Ho, Wo)
    kT, kH, kW = kernel
    sT, sH, sW = stride
    pT, pH, pW = padding
    xp = jnp.pad(x, ((0, 0), (0, 0), (pT, pT), (pH, pH), (pW, pW)),
                 constant_values=pad_value)
    Tp, Hp, Wp = xp.shape[2], xp.shape[3], xp.shape[4]
    To = (Tp - kT) // sT + 1
    Ho = (Hp - kH) // sH + 1
    Wo = (Wp - kW) // sW + 1
    taps = []
    for dt in range(kT):
        for dh in range(kH):
            for dw in range(kW):
                taps.append(xp[:, :,
                               dt:dt + (To - 1) * sT + 1:sT,
                               dh:dh + (Ho - 1) * sH + 1:sH,
                               dw:dw + (Wo - 1) * sW + 1:sW])
    patches = jnp.stack(taps, axis=2)
    return patches, (To, Ho, Wo)


# --------------------------------------------------------------------------
# MViT forward pieces
# --------------------------------------------------------------------------
def patch_embed(x, w, b):
    # Conv3d(3, C, kernel (3,7,7), stride (2,4,4), pad (1,3,3)) via im2col+matmul
    # TODO(synk): replace the HBM im2col with an in-kernel halo gather (as done
    # for the pooling path) to kill the one-time 147x expansion.
    patches, thw = _extract_patches_3d(x, (3, 7, 7), (2, 4, 4), (1, 3, 3))
    B, Cin, K, To, Ho, Wo = patches.shape
    p = patches.transpose(0, 3, 4, 5, 1, 2).reshape(B * To * Ho * Wo, Cin * K)
    y = matmul_fused(p, w, b)
    return y.reshape(B, To * Ho * Wo, -1), thw


def cls_positional_encoding(x, params, thw):
    B, N, C = x.shape
    T, H, W = thw
    cls = jnp.broadcast_to(params["cls_token"].astype(x.dtype), (B, 1, C))
    x = jnp.concatenate([cls, x], axis=1)
    pos = (jnp.tile(params["pos_spatial"], (T, 1))
           + jnp.repeat(params["pos_temporal"], H * W, axis=0))
    pos = jnp.concatenate([params["pos_class"], pos], axis=0)
    return x + pos[None].astype(x.dtype)


def attention_pool(x, pool, thw):
    # x: (B, heads, N, hd) with the cls token at position 0; heads are merged
    # into the channel (lane) dim so the pooling kernel sees dense lanes.
    if pool is None:
        return x, thw
    B, H, N, hd = x.shape
    T, Hh, Ww = thw
    cls_tok, xs = x[:, :, :1, :], x[:, :, 1:, :]
    x_cl = (xs.reshape(B, H, T, Hh, Ww, hd)
              .transpose(0, 2, 3, 4, 1, 5)
              .reshape(B, T, Hh, Ww, H * hd))
    y = pool3d(x_cl, pool["kernel"], pool["stride"], pool["padding"],
               pool["mode"], pool.get("weight"))
    _, To, Ho, Wo, _ = y.shape
    y = (y.reshape(B, To, Ho, Wo, H, hd)
          .transpose(0, 4, 1, 2, 3, 5)
          .reshape(B, H, To * Ho * Wo, hd))
    y = jnp.concatenate([cls_tok, y], axis=2)
    return y, (To, Ho, Wo)


def multiscale_block(x, thw, p):
    B, N, C = x.shape
    num_heads = p["num_heads"]
    head_dim = C // num_heads
    scale = head_dim ** -0.5
    attn = p["attn"]

    # skip-path pooling (max) computed up-front so it fuses into the attention
    # output-projection epilogue
    if p.get("pool_skip") is not None:
        x_res, _ = attention_pool(x[:, None, :, :], p["pool_skip"], thw)
        x_res = x_res[:, 0]
    else:
        x_res = x

    # norm1 fused into the (C, 3C) qkv projection
    qkv = ln_linear(x, p["norm1_g"], p["norm1_b"], attn["wqkv"], attn["bqkv"])
    qkv = qkv.reshape(B, N, 3, num_heads, head_dim).transpose(2, 0, 3, 1, 4)
    q, k, v = qkv[0], qkv[1], qkv[2]                          # (B, H, N, hd)

    q, q_thw = attention_pool(q, attn.get("pool_q"), thw)
    k, _ = attention_pool(k, attn.get("pool_k"), thw)
    v, _ = attention_pool(v, attn.get("pool_v"), thw)
    Nq, Nk = q.shape[2], k.shape[2]

    o = attention(q.reshape(B * num_heads, Nq, head_dim),
                  k.reshape(B * num_heads, Nk, head_dim),
                  v.reshape(B * num_heads, Nk, head_dim),
                  scale,
                  norm_q=attn.get("norm_q"),
                  norm_k=attn.get("norm_k"),
                  norm_v=attn.get("norm_v"))
    o = (o.reshape(B, num_heads, Nq, head_dim)
          .transpose(0, 2, 1, 3).reshape(B, Nq, C))

    # output projection with the skip-path residual fused into the epilogue
    x_attn = linear(o, attn["wo"], attn["bo"], residual=x_res)

    # norm2 + MLP (+ optional dim-change projection) fused into one kernel
    x_out = ln_mlp(x_attn, p["norm2_g"], p["norm2_b"],
                   p["mlp_w1"], p["mlp_b1"], p["mlp_w2"], p["mlp_b2"],
                   p.get("proj_w"), p.get("proj_b"))
    return x_out, q_thw


def feature_model_forward(x, params):
    x = x.astype(jnp.bfloat16)
    x_tok, thw = patch_embed(x, params["patch_embed_w"], params["patch_embed_b"])
    x_tok = cls_positional_encoding(x_tok, params, thw)
    for bp in params["blocks"]:
        x_tok, thw = multiscale_block(x_tok, thw, bp)
    return x_tok, thw


# --------------------------------------------------------------------------
# Deterministic parameter construction (scaled-down MViT config, bf16 weights)
# --------------------------------------------------------------------------
def build_params(key):
    kit = iter(jax.random.split(key, 256))

    def nrm(shape, scale=0.02, dtype=jnp.bfloat16):
        return (scale * jax.random.normal(next(kit), shape,
                                          dtype=jnp.float32)).astype(dtype)

    T_p, H_p, W_p = 4, 8, 8           # patch grid for input (T=8, H=W=32)
    embed_dim = 16
    params = {
        "patch_embed_w": nrm((3 * 3 * 7 * 7, embed_dim)),
        "patch_embed_b": jnp.zeros((embed_dim,), jnp.float32),
        "cls_token": nrm((1, 1, embed_dim), dtype=jnp.float32),
        "pos_spatial": nrm((H_p * W_p, embed_dim), dtype=jnp.float32),
        "pos_temporal": nrm((T_p, embed_dim), dtype=jnp.float32),
        "pos_class": nrm((1, embed_dim), dtype=jnp.float32),
    }

    block_cfg = [
        dict(dim=16, dim_out=32, heads=1, q_stride=None, kv_stride=(1, 2, 2)),
        dict(dim=32, dim_out=32, heads=2, q_stride=(1, 2, 2), kv_stride=(1, 1, 1)),
        dict(dim=32, dim_out=32, heads=2, q_stride=None, kv_stride=(1, 1, 1)),
    ]

    def dw_weight(hd, heads):
        # same per-head depthwise conv weight, pre-tiled across heads (lane-dense)
        return jnp.tile(nrm((27, hd)), (1, heads))

    blocks = []
    for cfg in block_cfg:
        d, d_out, h = cfg["dim"], cfg["dim_out"], cfg["heads"]
        hd = d // h
        bp = dict(num_heads=h,
                  norm1_g=jnp.ones((d,), jnp.float32),
                  norm1_b=jnp.zeros((d,), jnp.float32),
                  norm2_g=jnp.ones((d,), jnp.float32),
                  norm2_b=jnp.zeros((d,), jnp.float32))
        attn = dict(
            # fused q/k/v projection weight: columns = [q | k | v]
            wqkv=nrm((d, 3 * d)), bqkv=jnp.zeros((3 * d,), jnp.float32),
            wo=nrm((d, d)), bo=jnp.zeros((d,), jnp.float32),
            pool_k=dict(mode="conv", kernel=(3, 3, 3), stride=cfg["kv_stride"],
                        padding=(1, 1, 1), weight=dw_weight(hd, h)),
            norm_k=dict(gamma=jnp.ones((hd,), jnp.float32),
                        beta=jnp.zeros((hd,), jnp.float32)),
            pool_v=dict(mode="conv", kernel=(3, 3, 3), stride=cfg["kv_stride"],
                        padding=(1, 1, 1), weight=dw_weight(hd, h)),
            norm_v=dict(gamma=jnp.ones((hd,), jnp.float32),
                        beta=jnp.zeros((hd,), jnp.float32)),
        )
        if cfg["q_stride"] is not None:
            attn["pool_q"] = dict(mode="conv", kernel=(3, 3, 3),
                                  stride=cfg["q_stride"], padding=(1, 1, 1),
                                  weight=dw_weight(hd, h))
            attn["norm_q"] = dict(gamma=jnp.ones((hd,), jnp.float32),
                                  beta=jnp.zeros((hd,), jnp.float32))
            sk = tuple(s + 1 if s > 1 else s for s in cfg["q_stride"])
            bp["pool_skip"] = dict(mode="max", kernel=sk, stride=cfg["q_stride"],
                                   padding=tuple(k // 2 for k in sk))
        bp["attn"] = attn
        hidden = d * 4
        bp["mlp_w1"] = nrm((d, hidden))
        bp["mlp_b1"] = jnp.zeros((hidden,), jnp.float32)
        bp["mlp_w2"] = nrm((hidden, d_out))
        bp["mlp_b2"] = jnp.zeros((d_out,), jnp.float32)
        if d != d_out:
            bp["proj_w"] = nrm((d, d_out))
            bp["proj_b"] = jnp.zeros((d_out,), jnp.float32)
        blocks.append(bp)
    params["blocks"] = blocks
    return params


# --------------------------------------------------------------------------
if __name__ == "__main__":
    # small video: batch=1, 3 channels, 8 frames, 32x32 spatial
    x = jax.random.normal(jax.random.PRNGKey(0), (1, 3, 8, 32, 32),
                          dtype=jnp.float32)
    params = build_params(jax.random.PRNGKey(42))

    out, thw = feature_model_forward(x, params)
    out = jax.block_until_ready(out)

    # block 1 pools q with stride (1,2,2): thw (4,8,8) -> (4,4,4); +1 cls token
    assert out.shape == (1, 4 * 4 * 4 + 1, 32), out.shape
    assert tuple(thw) == (4, 4, 4), thw
    assert bool(jnp.all(jnp.isfinite(out.astype(jnp.float32))))
    print("KERNEL_OK")
</pallas_src>

<mosaic_0001>
module attributes {stable_mosaic.version = 11 : i64} {
  func.func @_mm_bias_kernel(%arg0: i32, %arg1: memref<128x441xbf16, #tpu.memory_space<vmem>>, %arg2: memref<441x16xbf16, #tpu.memory_space<vmem>>, %arg3: memref<1x16xf32, #tpu.memory_space<vmem>>, %arg4: memref<128x16xbf16, #tpu.memory_space<vmem>>) attributes {dimension_semantics = [#tpu.dimension_semantics<parallel>], iteration_bounds = array<i64: 2>, scalar_prefetch = 0 : i64, scratch_operands = 0 : i64, tpu.core_type = #tpu.core_type<tc>, window_params = [{transform_indices = @transform_0, window_bounds = array<i64: 128, 441>}, {pipeline_mode = #tpu.pipeline_mode<synchronous>, transform_indices = @transform_1, window_bounds = array<i64: 441, 16>}, {pipeline_mode = #tpu.pipeline_mode<synchronous>, transform_indices = @transform_2, window_bounds = array<i64: 1, 16>}, {transform_indices = @transform_3, window_bounds = array<i64: 128, 16>}]} {
    %c0 = arith.constant 0 : index
    %c0_0 = arith.constant 0 : index
    %0 = vector.load %arg1[%c0, %c0_0] : memref<128x441xbf16, #tpu.memory_space<vmem>>, vector<128x441xbf16>
    %c0_1 = arith.constant 0 : index
    %c0_2 = arith.constant 0 : index
    %1 = vector.load %arg2[%c0_1, %c0_2] : memref<441x16xbf16, #tpu.memory_space<vmem>>, vector<441x16xbf16>
    %cst = arith.constant dense<0.000000e+00> : vector<128x16xf32>
    %2 = tpu.matmul %0, %1, %cst {dimension_numbers = #tpu.dot_dimension_numbers<[1], [0], [0], [1], [0, 0, 1, 1], [], []>} : vector<128x441xbf16>, vector<441x16xbf16>, vector<128x16xf32> -> vector<128x16xf32>
    %c0_3 = arith.constant 0 : index
    %c0_4 = arith.constant 0 : index
    %3 = vector.load %arg3[%c0_3, %c0_4] : memref<1x16xf32, #tpu.memory_space<vmem>>, vector<1x16xf32>
    %4 = vector.broadcast %3 : vector<1x16xf32> to vector<128x16xf32>
    %5 = arith.addf %2, %4 : vector<128x16xf32>
    %6 = arith.truncf %5 : vector<128x16xf32> to vector<128x16xbf16>
    %c0_5 = arith.constant 0 : index
    %c0_6 = arith.constant 0 : index
    %7 = vector.load %arg4[%c0_5, %c0_6] : memref<128x16xbf16, #tpu.memory_space<vmem>>, vector<128x16xbf16>
    tpu.vector_store %arg4[%c0_5, %c0_6], %6 {strides = array<i32>} : memref<128x16xbf16, #tpu.memory_space<vmem>>, vector<128x16xbf16>,
    return
  }
  func.func @transform_0(%arg0: i32) -> (i32, i32) {
    %c0_i32 = arith.constant 0 : i32
    %c0_i32_0 = arith.constant 0 : i32
    return %arg0, %c0_i32 : i32, i32
  }
  func.func @transform_1(%arg0: i32) -> (i32, i32) {
    %c0_i32 = arith.constant 0 : i32
    %c0_i32_0 = arith.constant 0 : i32
    %c0_i32_1 = arith.constant 0 : i32
    return %c0_i32, %c0_i32_0 : i32, i32
  }
  func.func @transform_2(%arg0: i32) -> (i32, i32) {
    %c0_i32 = arith.constant 0 : i32
    %c0_i32_0 = arith.constant 0 : i32
    %c0_i32_1 = arith.constant 0 : i32
    return %c0_i32, %c0_i32_0 : i32, i32
  }
  func.func @transform_3(%arg0: i32) -> (i32, i32) {
    %c0_i32 = arith.constant 0 : i32
    %c0_i32_0 = arith.constant 0 : i32
    return %arg0, %c0_i32 : i32, i32
  }
}

</mosaic_0001>

<llo_original>
// kernel: tpu_custom_call.1
$region0: #{tpu_custom_call.1}
  #allocation0 [shape = 'u32[]', space=smem, size = 0x4, offset = 0x4, fixed_abs, tag = 'smem constant byte address 0x4 - core index']
  #allocation1 [shape = 'u32[144,128]{1,0:T(1,128)}', space=vmem, size = 0x12000, scoped, tag = 'internal scratch']
  %s0 = inlined_call_operand.vmem [shape: bf16[256,441], index: 0, kind: input, shape index: {}]
  %s1 = inlined_call_operand.vmem [shape: bf16[441,16], index: 1, kind: input, shape index: {}]
  %s2 = inlined_call_operand.vmem [shape: f32[1,16], index: 2, kind: input, shape index: {}]
  %s3 = inlined_call_operand.vmem [shape: bf16[256,16], index: 3, kind: output, shape index: {}]
  %s4 = sld [smem:[#allocation0]]
  $region45: #{tpu_custom_call.1} parent=0
    _
  %s6 = ssub.s32 1, %s4
  %s7 = scalar_select 0, %s6, %s4
  loop: start=0, step=1, limit=4
  $region2: #{tpu_custom_call.1} parent=0 // loop_pre_header
    _
  $region3: #{tpu_custom_call.1} parent=0 // loop_header
    %s9 = sphi 0, %s13
    %p10 = scmp.ge.s32.totalorder %s9, 4
    %s19 = sphi 0, %s21
    %s22 = sphi 0, %s19
    %s23 = sphi 0, %s22
    %s39 = sphi 0, %s23
    %s43 = sphi 0, %s43
    %s45 = sphi 0, %s43
    %s46 = sphi 0, %s45
    %s60 = sphi 0, %s46
    %s64 = sphi 0, %s64
    %s66 = sphi 0, %s64
    %s67 = sphi 0, %s66
    %s81 = sphi 0, %s67
    %s87 = sphi 0, %s89
    %s90 = sphi 0, %s87
    %s91 = sphi 0, %s90
    %s107 = sphi 0, %s91
  $region4: #{tpu_custom_call.1} parent=0 // loop_header_branch
    %12 = sbr.rel (%p10) target = $region8
  $region5: #{tpu_custom_call.1} parent=0 // loop_body
    %s14 = ssub.s32 %s9, 1
    %s15 = ssub.s32 %s9, 2
    %s16 = sadd.s32 %s9, 1
    %s17 = ssub.s32 %s9, %s16
    %p18 = scmp.eq.s32.totalorder %s17, 0
    %s20 = sadd.s32 %s19, 1
    %s21 = scalar_select %p18, %s19, %s20
    %p24 = pneg %p18
    %p25 = scmp.eq.s32.totalorder %s9, 1
    %p26 = por %p24, %p25
    %p27 = scmp.ne.s32.totalorder %s19, %s22
    %p28 = scmp.eq.s32.totalorder %s9, 0
    %p29 = por %p27, %p28
    %p30 = scmp.ne.s32.totalorder %s19, %s22
    %p31 = scmp.eq.s32.totalorder %s14, 1
    %p32 = por %p30, %p31
    %p33 = scmp.ne.s32.totalorder %s22, %s23
    %p34 = scmp.eq.s32.totalorder %s14, 0
    %p35 = por %p33, %p34
    %p36 = scmp.ne.s32.totalorder %s22, %s23
    %p37 = scmp.eq.s32.totalorder %s15, 1
    %p38 = por %p36, %p37
    %p40 = scmp.ne.s32.totalorder %s23, %s39
    %p41 = scmp.eq.s32.totalorder %s15, 0
    %p42 = por %p40, %p41
    %s44 = sadd.s32 %s43, 1
    %p47 = scmp.eq.s32.totalorder %s9, 1
    %p48 = scmp.ne.s32.totalorder %s43, %s45
    %p49 = scmp.eq.s32.totalorder %s9, 0
    %p50 = por %p48, %p49
    %p51 = scmp.ne.s32.totalorder %s43, %s45
    %p52 = scmp.eq.s32.totalorder %s14, 1
    %p53 = por %p51, %p52
    %p54 = scmp.ne.s32.totalorder %s45, %s46
    %p55 = scmp.eq.s32.totalorder %s14, 0
    %p56 = por %p54, %p55
    %p57 = scmp.ne.s32.totalorder %s45, %s46
    %p58 = scmp.eq.s32.totalorder %s15, 1
    %p59 = por %p57, %p58
    %p61 = scmp.ne.s32.totalorder %s46, %s60
    %p62 = scmp.eq.s32.totalorder %s15, 0
    %p63 = por %p61, %p62
    %s65 = sadd.s32 %s64, 1
    %p68 = scmp.eq.s32.totalorder %s9, 1
    %p69 = scmp.ne.s32.totalorder %s64, %s66
    %p70 = scmp.eq.s32.totalorder %s9, 0
    %p71 = por %p69, %p70
    %p72 = scmp.ne.s32.totalorder %s64, %s66
    %p73 = scmp.eq.s32.totalorder %s14, 1
    %p74 = por %p72, %p73
    %p75 = scmp.ne.s32.totalorder %s66, %s67
    %p76 = scmp.eq.s32.totalorder %s14, 0
    %p77 = por %p75, %p76
    %p78 = scmp.ne.s32.totalorder %s66, %s67
    %p79 = scmp.eq.s32.totalorder %s15, 1
    %p80 = por %p78, %p79
    %p82 = scmp.ne.s32.totalorder %s67, %s81
    %p83 = scmp.eq.s32.totalorder %s15, 0
    %p84 = por %p82, %p83
    %s85 = ssub.s32 %s9, %s16
    %p86 = scmp.eq.s32.totalorder %s85, 0
    %s88 = sadd.s32 %s87, 1
    %s89 = scalar_select %p86, %s87, %s88
    %p92 = pneg %p86
    %p93 = scmp.eq.s32.totalorder %s9, 1
    %p94 = por %p92, %p93
    %p95 = scmp.ne.s32.totalorder %s87, %s90
    %p96 = scmp.eq.s32.totalorder %s9, 0
    %p97 = por %p95, %p96
    %p98 = scmp.ne.s32.totalorder %s87, %s90
    %p99 = scmp.eq.s32.totalorder %s14, 1
    %p100 = por %p98, %p99
    %p101 = scmp.ne.s32.totalorder %s90, %s91
    %p102 = scmp.eq.s32.totalorder %s14, 0
    %p103 = por %p101, %p102
    %p104 = scmp.ne.s32.totalorder %s90, %s91
    %p105 = scmp.eq.s32.totalorder %s15, 1
    %p106 = por %p104, %p105
    %p108 = scmp.ne.s32.totalorder %s91, %s107
    %p109 = scmp.eq.s32.totalorder %s15, 0
    %p110 = por %p108, %p109
    %p111 = scmp.le.s32.totalorder 1, %s9
    %p112 = scmp.lt.s32.totalorder %s9, 3
    %p113 = pnand %p111, %p112
    %p114 = pneg %p113
    // Predicated region
    $region9: #{tpu_custom_call.1} parent=5 // pred_check
      _
    $region10: #{tpu_custom_call.1} parent=5 // pred_check_branch
      %116 = sbr.rel (%p113) target = $region12
    $region11: #{tpu_custom_call.1} parent=5 // pred_region
      %s117 = ssub.s32 %s9, 1
      // Predicated region
      $region13: #{tpu_custom_call.1} parent=11 // pred_check
        %p118 = pneg %p56
      $region14: #{tpu_custom_call.1} parent=11 // pred_check_branch
        %120 = sbr.rel (%p118) target = $region16
      $region15: #{tpu_custom_call.1} parent=11 // pred_region
        _
      $region16: #{tpu_custom_call.1} parent=11 // pred_fallthru
        _
      // Predicated region
      $region17: #{tpu_custom_call.1} parent=11 // pred_check
        %p121 = pneg %p77
      $region18: #{tpu_custom_call.1} parent=11 // pred_check_branch
        %123 = sbr.rel (%p121) target = $region20
      $region19: #{tpu_custom_call.1} parent=11 // pred_region
        _
      $region20: #{tpu_custom_call.1} parent=11 // pred_fallthru
        _
    $region12: #{tpu_custom_call.1} parent=5 // pred_fallthru
      _
    %p124 = scmp.lt.s32.totalorder %s9, 2
    // Predicated region
    $region21: #{tpu_custom_call.1} parent=5 // pred_check
      %p125 = pneg %p124
    $region22: #{tpu_custom_call.1} parent=5 // pred_check_branch
      %127 = sbr.rel (%p125) target = $region24
    $region23: #{tpu_custom_call.1} parent=5 // pred_region
      // Predicated region
      $region25: #{tpu_custom_call.1} parent=23 // pred_check
        %p128 = pneg %p29
      $region26: #{tpu_custom_call.1} parent=23 // pred_check_branch
        %130 = sbr.rel (%p128) target = $region28
      $region27: #{tpu_custom_call.1} parent=23 // pred_region
        %s131 = smul.u32 16, %s9
        %p132 = scmp.lt.s32.totalorder %s131, 31
        %s133 = scalar_select %p132, %s131, 31
        %s134 = smul.addr %s133, 4
        %s135 = smul.addr %s134, 4
        %s136 = scalar_lea.vmem %s0, %s135
        %s137 = smul.u32 16, %s9
      $region28: #{tpu_custom_call.1} parent=23 // pred_fallthru
        _
    $region24: #{tpu_custom_call.1} parent=5 // pred_fallthru
      _
    %p138 = scmp.le.s32.totalorder 1, %s9
    %p139 = scmp.lt.s32.totalorder %s9, 3
    %p140 = pnand %p138, %p139
    %p141 = pneg %p140
    // Predicated region
    $region29: #{tpu_custom_call.1} parent=5 // pred_check
      _
    $region30: #{tpu_custom_call.1} parent=5 // pred_check_branch
      %143 = sbr.rel (%p140) target = $region32
    $region31: #{tpu_custom_call.1} parent=5 // pred_region
      %s144 = ssub.s32 %s9, 1
      %s145 = smul.u32 16, %s14
      %p146 = scmp.lt.s32.totalorder %s145, 31
      %s147 = scalar_select %p146, %s145, 31
      %s148 = smul.addr %s147, 4
      %s149 = smul.addr %s148, 4
      %s150 = scalar_lea.vmem %s0, %s149
      %p151 = pneg %p35
      %p152 = pneg %p32
      %p153 = pneg %p56
      %p154 = pneg %p53
      %p155 = pneg %p77
      %p156 = pneg %p74
      %p157 = pneg %p103
      %p158 = pneg %p100
      %s159 = smul.u32 16, %s14
      %p160 = scmp.lt.s32.totalorder %s159, 31
      %s161 = scalar_select %p160, %s159, 31
      %s162 = smul.addr %s161, 4
      %s163 = scalar_lea.vmem %s3, %s162
      %s164 = smul.u32 16, %s14
      %p165 = scmp.lt.s32.totalorder %s164, 31
      %s166 = scalar_select %p165, %s164, 31
      %s167 = smul.addr %s166, 4
      %s168 = smul.addr %s167, 4
      %s169 = scalar_lea.vmem %s0, %s168
      %s170 = smul.u32 16, %s14
      %s171 = smul.u32 16, %s14
      %p172 = scmp.lt.s32.totalorder %s171, 31
      %s173 = scalar_select %p172, %s171, 31
      %s174 = smul.addr %s173, 4
      %s175 = scalar_lea.vmem %s3, %s174
      %s176 = smul.u32 16, %s14
      %v178 = vld [vmem:[%s169] sm:$0xff]
      %v179 = vld [vmem:[%s169 + $0x8] sm:$0xff]
      %v180 = vld [vmem:[%s169 + $0x10] sm:$0xff]
      %v181 = vld [vmem:[%s169 + $0x18] sm:$0xff]
      %v182 = vld [vmem:[%s169 + $0x20] sm:$0xff]
      %v183 = vld [vmem:[%s169 + $0x28] sm:$0xff]
      %v184 = vld [vmem:[%s169 + $0x30] sm:$0xff]
      %v185 = vld [vmem:[%s169 + $0x38] sm:$0xff]
      %v186 = vld [vmem:[%s169 + $0x40] sm:$0xff]
      %v187 = vld [vmem:[%s169 + $0x48] sm:$0xff]
      %v188 = vld [vmem:[%s169 + $0x50] sm:$0xff]
      %v189 = vld [vmem:[%s169 + $0x58] sm:$0xff]
      %v190 = vld [vmem:[%s169 + $0x60] sm:$0xff]
      %v191 = vld [vmem:[%s169 + $0x68] sm:$0xff]
      %v192 = vld [vmem:[%s169 + $0x70] sm:$0xff]
      %v193 = vld [vmem:[%s169 + $0x78] sm:$0xff]
      %v194 = vld [vmem:[%s169 + $0x80] sm:$0xff]
      %v195 = vld [vmem:[%s169 + $0x88] sm:$0xff]
      %v196 = vld [vmem:[%s169 + $0x90] sm:$0xff]
      %v197 = vld [vmem:[%s169 + $0x98] sm:$0xff]
      %v198 = vld [vmem:[%s169 + $0xa0] sm:$0xff]
      %v199 = vld [vmem:[%s169 + $0xa8] sm:$0xff]
      %v200 = vld [vmem:[%s169 + $0xb0] sm:$0xff]
      %v201 = vld [vmem:[%s169 + $0xb8] sm:$0xff]
      %v202 = vld [vmem:[%s169 + $0xc0] sm:$0xff]
      %v203 = vld [vmem:[%s169 + $0xc8] sm:$0xff]
      %v204 = vld [vmem:[%s169 + $0xd0] sm:$0xff]
      %v205 = vld [vmem:[%s169 + $0xd8] sm:$0xff]
      %v206 = vld [vmem:[%s169 + $0xe0] sm:$0xff]
      %v207 = vld [vmem:[%s169 + $0xe8] sm:$0xff]
      %v208 = vld [vmem:[%s169 + $0xf0] sm:$0xff]
      %v209 = vld [vmem:[%s169 + $0xf8] sm:$0xff]
      %v210 = vld [vmem:[%s1] sm:$0xf]
      %v211 = vld [vmem:[%s1 + $0x4] sm:$0xf]
      %v212 = vld [vmem:[%s1 + $0x8] sm:$0xf]
      %v213 = vld [vmem:[%s1 + $0xc] sm:$0xf]
      %v214 = vld [vmem:[%s1 + $0x10] sm:$0xf]
      %v215 = vld [vmem:[%s1 + $0x14] sm:$0xf]
      %v216 = vld [vmem:[%s1 + $0x18] sm:$0xf]
      %v217 = vld [vmem:[%s1 + $0x1c] sm:$0xf]
      %v218 = vld [vmem:[%s1 + $0x20] sm:$0xf]
      %v219 = vld [vmem:[%s1 + $0x24] sm:$0xf]
      %v220 = vld [vmem:[%s1 + $0x28] sm:$0xf]
      %v221 = vld [vmem:[%s1 + $0x2c] sm:$0xf]
      %v222 = vld [vmem:[%s1 + $0x30] sm:$0xf]
      %v223 = vld [vmem:[%s1 + $0x34] sm:$0xf]
      %v224 = vld [vmem:[%s1 + $0x38] sm:$0xf]
      %v225 = vld [vmem:[%s1 + $0x3c] sm:$0xf]
      %v226 = vld [vmem:[%s1 + $0x40] sm:$0xf]
      %v227 = vld [vmem:[%s1 + $0x44] sm:$0xf]
      %v228 = vld [vmem:[%s1 + $0x48] sm:$0xf]
      %v229 = vld [vmem:[%s1 + $0x4c] sm:$0xf]
      %v230 = vld [vmem:[%s1 + $0x50] sm:$0xf]
      %v231 = vld [vmem:[%s1 + $0x54] sm:$0xf]
      %v232 = vld [vmem:[%s1 + $0x58] sm:$0xf]
      %v233 = vld [vmem:[%s1 + $0x5c] sm:$0xf]
      %v234 = vld [vmem:[%s1 + $0x60] sm:$0xf]
      %v235 = vld [vmem:[%s1 + $0x64] sm:$0xf]
      %v236 = vld [vmem:[%s1 + $0x68] sm:$0xf]
      %v237 = vld [vmem:[%s1 + $0x6c] sm:$0xf]
      %v238 = vld [vmem:[%s1 + $0x70] sm:$0xf]
      %v239 = vld [vmem:[%s1 + $0x74] sm:$0xf]
      %v240 = vld [vmem:[%s1 + $0x78] sm:$0xf]
      %v241 = vld [vmem:[%s1 + $0x7c] sm:$0xf]
      %v242 = vld [vmem:[%s1 + $0x80] sm:$0xf]
      %v243 = vld [vmem:[%s1 + $0x84] sm:$0xf]
      %v244 = vld [vmem:[%s1 + $0x88] sm:$0xf]
      %v245 = vld [vmem:[%s1 + $0x8c] sm:$0xf]
      %v246 = vld [vmem:[%s1 + $0x90] sm:$0xf]
      %v247 = vld [vmem:[%s1 + $0x94] sm:$0xf]
      %v248 = vld [vmem:[%s1 + $0x98] sm:$0xf]
      %v249 = vld [vmem:[%s1 + $0x9c] sm:$0xf]
      %v250 = vld [vmem:[%s1 + $0xa0] sm:$0xf]
      %v251 = vld [vmem:[%s1 + $0xa4] sm:$0xf]
      %v252 = vld [vmem:[%s1 + $0xa8] sm:$0xf]
      %v253 = vld [vmem:[%s1 + $0xac] sm:$0xf]
      %v254 = vld [vmem:[%s1 + $0xb0] sm:$0xf]
      %v255 = vld [vmem:[%s1 + $0xb4] sm:$0xf]
      %v256 = vld [vmem:[%s1 + $0xb8] sm:$0xf]
      %v257 = vld [vmem:[%s1 + $0xbc] sm:$0xf]
      %v258 = vld [vmem:[%s1 + $0xc0] sm:$0xf]
      %v259 = vld [vmem:[%s1 + $0xc4] sm:$0xf]
      %v260 = vld [vmem:[%s1 + $0xc8] sm:$0xf]
      %v261 = vld [vmem:[%s1 + $0xcc] sm:$0xf]
      %v262 = vld [vmem:[%s1 + $0xd0] sm:$0xf]
      %v263 = vld [vmem:[%s1 + $0xd4] sm:$0xf]
      %v264 = vld [vmem:[%s1 + $0xd8] sm:$0xf]
      %v265 = vld [vmem:[%s1 + $0xdc] sm:$0x1]
      %v266 = vld [vmem:[%s2] sm:$0x1]
      %v268 = vlaneseq
      %v269 = vshrl.u32 %v268, 7
      %v270 = vsub.s32 0, %v269
      %v271 = vrot.slane %v266, %v270
      %v305 = vunpack.c.l.b16 %v178
      %v306 = vunpack.c.h.b16 %v178
      %v307 = vunpack.c.l.b16 %v179
      %v308 = vunpack.c.h.b16 %v179
      %v309 = vunpack.c.l.b16 %v180
      %v310 = vunpack.c.h.b16 %v180
      %v311 = vunpack.c.l.b16 %v181
      %v312 = vunpack.c.h.b16 %v181
      %v313 = vunpack.c.l.b16 %v182
      %v314 = vunpack.c.h.b16 %v182
      %v315 = vunpack.c.l.b16 %v183
      %v316 = vunpack.c.h.b16 %v183
      %v317 = vunpack.c.l.b16 %v184
      %v318 = vunpack.c.h.b16 %v184
      %v319 = vunpack.c.l.b16 %v185
      %v320 = vunpack.c.h.b16 %v185
      %v321 = vunpack.c.l.b16 %v186
      %v322 = vunpack.c.h.b16 %v186
      %v323 = vunpack.c.l.b16 %v187
      %v324 = vunpack.c.h.b16 %v187
      %v325 = vunpack.c.l.b16 %v188
      %v326 = vunpack.c.h.b16 %v188
      %v327 = vunpack.c.l.b16 %v189
      %v328 = vunpack.c.h.b16 %v189
      %v329 = vunpack.c.l.b16 %v190
      %v330 = vunpack.c.h.b16 %v190
      %v331 = vunpack.c.l.b16 %v191
      %v332 = vunpack.c.h.b16 %v191
      %v333 = vunpack.c.l.b16 %v192
      %v334 = vunpack.c.h.b16 %v192
      %v335 = vunpack.c.l.b16 %v193
      %v336 = vunpack.c.h.b16 %v193
      %v337 = vunpack.c.l.b16 %v194
      %v338 = vunpack.c.h.b16 %v194
      %v339 = vunpack.c.l.b16 %v195
      %v340 = vunpack.c.h.b16 %v195
      %v341 = vunpack.c.l.b16 %v196
      %v342 = vunpack.c.h.b16 %v196
      %v343 = vunpack.c.l.b16 %v197
      %v344 = vunpack.c.h.b16 %v197
      %v345 = vunpack.c.l.b16 %v198
      %v346 = vunpack.c.h.b16 %v198
      %v347 = vunpack.c.l.b16 %v199
      %v348 = vunpack.c.h.b16 %v199
      %v349 = vunpack.c.l.b16 %v200
      %v350 = vunpack.c.h.b16 %v200
      %v351 = vunpack.c.l.b16 %v201
      %v352 = vunpack.c.h.b16 %v201
      %v353 = vunpack.c.l.b16 %v202
      %v354 = vunpack.c.h.b16 %v202
      %v355 = vunpack.c.l.b16 %v203
      %v356 = vunpack.c.h.b16 %v203
      %v357 = vunpack.c.l.b16 %v204
      %v358 = vunpack.c.h.b16 %v204
      %v359 = vunpack.c.l.b16 %v205
      %v360 = vunpack.c.h.b16 %v205
      %v361 = vunpack.c.l.b16 %v206
      %v362 = vunpack.c.h.b16 %v206
      %v363 = vunpack.c.l.b16 %v207
      %v364 = vunpack.c.h.b16 %v207
      %v365 = vunpack.c.l.b16 %v208
      %v366 = vunpack.c.h.b16 %v208
      %v367 = vunpack.c.l.b16 %v209
      %v368 = vunpack.c.h.b16 %v209
      %v369 = vpack.c.b16 %v309, %v305
      %v370 = vpack.c.b16 %v310, %v306
      %v371 = vpack.c.b16 %v311, %v307
      %v372 = vpack.c.b16 %v312, %v308
      %v373 = vpack.c.b16 %v317, %v313
      %v374 = vpack.c.b16 %v318, %v314
      %v375 = vpack.c.b16 %v319, %v315
      %v376 = vpack.c.b16 %v320, %v316
      %v377 = vpack.c.b16 %v325, %v321
      %v378 = vpack.c.b16 %v326, %v322
      %v379 = vpack.c.b16 %v327, %v323
      %v380 = vpack.c.b16 %v328, %v324
      %v381 = vpack.c.b16 %v333, %v329
      %v382 = vpack.c.b16 %v334, %v330
      %v383 = vpack.c.b16 %v335, %v331
      %v384 = vpack.c.b16 %v336, %v332
      %v385 = vpack.c.b16 %v341, %v337
      %v386 = vpack.c.b16 %v342, %v338
      %v387 = vpack.c.b16 %v343, %v339
      %v388 = vpack.c.b16 %v344, %v340
      %v389 = vpack.c.b16 %v349, %v345
      %v390 = vpack.c.b16 %v350, %v346
      %v391 = vpack.c.b16 %v351, %v347
      %v392 = vpack.c.b16 %v352, %v348
      %v393 = vpack.c.b16 %v357, %v353
      %v394 = vpack.c.b16 %v358, %v354
      %v395 = vpack.c.b16 %v359, %v355
      %v396 = vpack.c.b16 %v360, %v356
      %v397 = vpack.c.b16 %v365, %v361
      %v398 = vpack.c.b16 %v366, %v362
      %v399 = vpack.c.b16 %v367, %v363
      %v400 = vpack.c.b16 %v368, %v364
      %v481 = vunpack.c.l.b16 %v210
      %v482 = vunpack.c.l.b16 %v211
      %v483 = vunpack.c.l.b16 %v212
      %v484 = vunpack.c.l.b16 %v213
      %v485 = vunpack.c.l.b16 %v214
      %v486 = vunpack.c.l.b16 %v215
      %v487 = vunpack.c.l.b16 %v216
      %v488 = vunpack.c.l.b16 %v217
      %v489 = vunpack.c.l.b16 %v218
      %v490 = vunpack.c.l.b16 %v219
      %v491 = vunpack.c.l.b16 %v220
      %v492 = vunpack.c.l.b16 %v221
      %v493 = vunpack.c.l.b16 %v222
      %v494 = vunpack.c.l.b16 %v223
      %v495 = vunpack.c.l.b16 %v224
      %v496 = vunpack.c.l.b16 %v225
      %v497 = vunpack.c.l.b16 %v226
      %v498 = vunpack.c.l.b16 %v227
      %v499 = vunpack.c.l.b16 %v228
      %v500 = vunpack.c.l.b16 %v229
      %v501 = vunpack.c.l.b16 %v230
      %v502 = vunpack.c.l.b16 %v231
      %v503 = vunpack.c.l.b16 %v232
      %v504 = vunpack.c.l.b16 %v233
      %v505 = vunpack.c.l.b16 %v234
      %v506 = vunpack.c.l.b16 %v235
      %v507 = vunpack.c.l.b16 %v236
      %v508 = vunpack.c.l.b16 %v237
      %v509 = vunpack.c.l.b16 %v238
      %v510 = vunpack.c.l.b16 %v239
      %v511 = vunpack.c.l.b16 %v240
      %v512 = vunpack.c.l.b16 %v241
      %v513 = vunpack.c.l.b16 %v242
      %v514 = vunpack.c.l.b16 %v243
      %v515 = vunpack.c.l.b16 %v244
      %v516 = vunpack.c.l.b16 %v245
      %v517 = vunpack.c.l.b16 %v246
      %v518 = vunpack.c.l.b16 %v247
      %v519 = vunpack.c.l.b16 %v248
      %v520 = vunpack.c.l.b16 %v249
      %v521 = vunpack.c.l.b16 %v250
      %v522 = vunpack.c.l.b16 %v251
      %v523 = vunpack.c.l.b16 %v252
      %v524 = vunpack.c.l.b16 %v253
      %v525 = vunpack.c.l.b16 %v254
      %v526 = vunpack.c.l.b16 %v255
      %v527 = vunpack.c.l.b16 %v256
      %v528 = vunpack.c.l.b16 %v257
      %v529 = vunpack.c.l.b16 %v258
      %v530 = vunpack.c.l.b16 %v259
      %v531 = vunpack.c.l.b16 %v260
      %v532 = vunpack.c.l.b16 %v261
      %v533 = vunpack.c.l.b16 %v262
      %v534 = vunpack.c.l.b16 %v263
      %v535 = vunpack.c.l.b16 %v264
      %v536 = vunpack.c.l.b16 %v265
      %v537 = vpack.c.b16 %v482, %v481
      %v538 = vpack.c.b16 %v484, %v483
      %v539 = vpack.c.b16 %v486, %v485
      %v540 = vpack.c.b16 %v488, %v487
      %v541 = vpack.c.b16 %v490, %v489
      %v542 = vpack.c.b16 %v492, %v491
      %v543 = vpack.c.b16 %v494, %v493
      %v544 = vpack.c.b16 %v496, %v495
      %v545 = vpack.c.b16 %v498, %v497
      %v546 = vpack.c.b16 %v500, %v499
      %v547 = vpack.c.b16 %v502, %v501
      %v548 = vpack.c.b16 %v504, %v503
      %v549 = vpack.c.b16 %v506, %v505
      %v550 = vpack.c.b16 %v508, %v507
      %v551 = vpack.c.b16 %v510, %v509
      %v552 = vpack.c.b16 %v512, %v511
      %v553 = vpack.c.b16 %v514, %v513
      %v554 = vpack.c.b16 %v516, %v515
      %v555 = vpack.c.b16 %v518, %v517
      %v556 = vpack.c.b16 %v520, %v519
      %v557 = vpack.c.b16 %v522, %v521
      %v558 = vpack.c.b16 %v524, %v523
      %v559 = vpack.c.b16 %v526, %v525
      %v560 = vpack.c.b16 %v528, %v527
      %v561 = vpack.c.b16 %v530, %v529
      %v562 = vpack.c.b16 %v532, %v531
      %v563 = vpack.c.b16 %v534, %v533
      %v564 = vpack.c.b16 %v536, %v535
      %vm592 = vcmask 465920
      %v594 = vsel %vm592, %v372, 0
      %v597 = vsel %vm592, %v376, 0
      %v600 = vsel %vm592, %v380, 0
      %v603 = vsel %vm592, %v384, 0
      %v606 = vsel %vm592, %v388, 0
      %v609 = vsel %vm592, %v392, 0
      %v612 = vsel %vm592, %v396, 0
      %v615 = vsel %vm592, %v400, 0
      %vm617 = vcmask 1043456
      %vm618 = vcmask 1044480
      %v619 = vsel %vm617, 4294967295, 65535
      %v620 = vsel %vm618, %v619, 0
      %v622 = vand.u32 %v564, %v620
      %624 = vmatprep.subr.bf16.mxu0 0
      %625 = vmatpush1.bf16.msra.mxu0 %v544
      %626 = vmatprep.subr.bf16.mxu0 0
      %627 = vmatpush1.bf16.msra.mxu0 %v543
      %628 = vmatprep.subr.bf16.mxu0 0
      %629 = vmatpush1.bf16.msra.mxu0 %v542
      %630 = vmatprep.subr.bf16.mxu0 0
      %631 = vmatpush1.bf16.msra.mxu0 %v541
      %632 = vmatprep.subr.bf16.mxu0 0
      %633 = vmatpush1.bf16.msra.mxu0 %v540
      %634 = vmatprep.subr.bf16.mxu0 0
      %635 = vmatpush1.bf16.msra.mxu0 %v539
      %636 = vmatprep.subr.bf16.mxu0 0
      %637 = vmatpush1.bf16.msra.mxu0 %v538
      %638 = vmatprep.subr.bf16.mxu0 0
      %639 = vmatpush1.bf16.msra.mxu0 %v537
      %640 = vmatprep.subr.bf16.mxu0 0
      %641 = vmatpush2.bf16.msra.mxu0 %v552
      %642 = vmatprep.subr.bf16.mxu0 0
      %643 = vmatpush2.bf16.msra.mxu0 %v551
      %644 = vmatprep.subr.bf16.mxu0 0
      %645 = vmatpush2.bf16.msra.mxu0 %v550
      %646 = vmatprep.subr.bf16.mxu0 0
      %647 = vmatpush2.bf16.msra.mxu0 %v549
      %648 = vmatprep.subr.bf16.mxu0 0
      %649 = vmatpush2.bf16.msra.mxu0 %v548
      %650 = vmatprep.subr.bf16.mxu0 0
      %651 = vmatpush2.bf16.msra.mxu0 %v547
      %652 = vmatprep.subr.bf16.mxu0 0
      %653 = vmatpush2.bf16.msra.mxu0 %v546
      %654 = vmatprep.subr.bf16.mxu0 0
      %655 = vmatpush2.bf16.msra.mxu0 %v545
      %656 = vmatprep.mubr.bf16.mxu0 %v370
      %657 = vmatmul.mubr.bf16.gmra.mxu0 %v369
      %v658 = vpop.f32.mrf.mxu0
      %v659 = vadd.f32 %v271, %v658
      %v660 = vpop.f32.mrf.mxu0
      %v661 = vpop.f32.mrf.mxu0
      %v662 = vadd.f32 %v271, %v661
      %v663 = vpop.f32.mrf.mxu0
      %664 = vmatprep.mubr.bf16.mxu0 %v374
      %665 = vmatmul.mubr.bf16.gmra.mxu0 %v373
      %v666 = vpop.f32.mrf.mxu0
      %v667 = vadd.f32 %v271, %v666
      %v668 = vpop.f32.mrf.mxu0
      %v669 = vpop.f32.mrf.mxu0
      %v670 = vadd.f32 %v271, %v669
      %v671 = vpop.f32.mrf.mxu0
      %672 = vmatprep.mubr.bf16.mxu0 %v378
      %673 = vmatmul.mubr.bf16.gmra.mxu0 %v377
      %v674 = vpop.f32.mrf.mxu0
      %v675 = vadd.f32 %v271, %v674
      %v676 = vpop.f32.mrf.mxu0
      %v677 = vpop.f32.mrf.mxu0
      %v678 = vadd.f32 %v271, %v677
      %v679 = vpop.f32.mrf.mxu0
      %680 = vmatprep.mubr.bf16.mxu0 %v382
      %681 = vmatmul.mubr.bf16.gmra.mxu0 %v381
      %v682 = vpop.f32.mrf.mxu0
      %v683 = vadd.f32 %v271, %v682
      %v684 = vpop.f32.mrf.mxu0
      %v685 = vpop.f32.mrf.mxu0
      %v686 = vadd.f32 %v271, %v685
      %v687 = vpop.f32.mrf.mxu0
      %688 = vmatprep.mubr.bf16.mxu0 %v386
      %689 = vmatmul.mubr.bf16.gmra.mxu0 %v385
      %v690 = vpop.f32.mrf.mxu0
      %v691 = vadd.f32 %v271, %v690
      %v692 = vpop.f32.mrf.mxu0
      %v693 = vpop.f32.mrf.mxu0
      %v694 = vadd.f32 %v271, %v693
      %v695 = vpop.f32.mrf.mxu0
      %696 = vmatprep.mubr.bf16.mxu0 %v390
      %697 = vmatmul.mubr.bf16.gmra.mxu0 %v389
      %v698 = vpop.f32.mrf.mxu0
      %v699 = vadd.f32 %v271, %v698
      %v700 = vpop.f32.mrf.mxu0
      %v701 = vpop.f32.mrf.mxu0
      %v702 = vadd.f32 %v271, %v701
      %v703 = vpop.f32.mrf.mxu0
      %704 = vmatprep.mubr.bf16.mxu0 %v394
      %705 = vmatmul.mubr.bf16.gmra.mxu0 %v393
      %v706 = vpop.f32.mrf.mxu0
      %v707 = vadd.f32 %v271, %v706
      %v708 = vpop.f32.mrf.mxu0
      %v709 = vpop.f32.mrf.mxu0
      %v710 = vadd.f32 %v271, %v709
      %v711 = vpop.f32.mrf.mxu0
      %712 = vmatprep.mubr.bf16.mxu0 %v398
      %713 = vmatmul.mubr.bf16.gmra.mxu0 %v397
      %v714 = vpop.f32.mrf.mxu0
      %v715 = vadd.f32 %v271, %v714
      %v716 = vpop.f32.mrf.mxu0
      %v717 = vpop.f32.mrf.mxu0
      %v718 = vadd.f32 %v271, %v717
      %v719 = vpop.f32.mrf.mxu0
      %720 = vdwg.mxu0
      %721 = vmatprep.subr.bf16.mxu0 0
      %722 = vmatpush1.bf16.msra.mxu0 %v560
      %723 = vmatprep.subr.bf16.mxu0 0
      %724 = vmatpush1.bf16.msra.mxu0 %v559
      %725 = vmatprep.subr.bf16.mxu0 0
      %726 = vmatpush1.bf16.msra.mxu0 %v558
      %727 = vmatprep.subr.bf16.mxu0 0
      %728 = vmatpush1.bf16.msra.mxu0 %v557
      %729 = vmatprep.subr.bf16.mxu0 0
      %730 = vmatpush1.bf16.msra.mxu0 %v556
      %731 = vmatprep.subr.bf16.mxu0 0
      %732 = vmatpush1.bf16.msra.mxu0 %v555
      %733 = vmatprep.subr.bf16.mxu0 0
      %734 = vmatpush1.bf16.msra.mxu0 %v554
      %735 = vmatprep.subr.bf16.mxu0 0
      %736 = vmatpush1.bf16.msra.mxu0 %v553
      %737 = vmatprep.subr.bf16.mxu0 0
      %738 = vmatpush2.bf16.msra.mxu0 0
      %739 = vmatprep.subr.bf16.mxu0 0
      %740 = vmatpush2.bf16.msra.mxu0 0
      %741 = vmatprep.subr.bf16.mxu0 0
      %742 = vmatpush2.bf16.msra.mxu0 0
      %743 = vmatprep.subr.bf16.mxu0 0
      %744 = vmatpush2.bf16.msra.mxu0 0
      %745 = vmatprep.subr.bf16.mxu0 0
      %746 = vmatpush2.bf16.msra.mxu0 %v622
      %747 = vmatprep.subr.bf16.mxu0 0
      %748 = vmatpush2.bf16.msra.mxu0 %v563
      %749 = vmatprep.subr.bf16.mxu0 0
      %750 = vmatpush2.bf16.msra.mxu0 %v562
      %751 = vmatprep.subr.bf16.mxu0 0
      %752 = vmatpush2.bf16.msra.mxu0 %v561
      %753 = vmatprep.mubr.bf16.mxu0 %v594
      %754 = vmatmul.mubr.bf16.gmra.mxu0 %v371
      %v755 = vpop.f32.mrf.mxu0
      %v756 = vadd.f32 %v659, %v755
      %v757 = vpop.f32.mrf.mxu0
      %v758 = vpop.f32.mrf.mxu0
      %v759 = vadd.f32 %v662, %v758
      %v760 = vpop.f32.mrf.mxu0
      %761 = vmatprep.mubr.bf16.mxu0 %v597
      %762 = vmatmul.mubr.bf16.gmra.mxu0 %v375
      %v763 = vpop.f32.mrf.mxu0
      %v764 = vadd.f32 %v667, %v763
      %v765 = vpop.f32.mrf.mxu0
      %v766 = vpop.f32.mrf.mxu0
      %v767 = vadd.f32 %v670, %v766
      %v768 = vpop.f32.mrf.mxu0
      %769 = vmatprep.mubr.bf16.mxu0 %v600
      %770 = vmatmul.mubr.bf16.gmra.mxu0 %v379
      %v771 = vpop.f32.mrf.mxu0
      %v772 = vadd.f32 %v675, %v771
      %v773 = vpop.f32.mrf.mxu0
      %v774 = vpop.f32.mrf.mxu0
      %v775 = vadd.f32 %v678, %v774
      %v776 = vpop.f32.mrf.mxu0
      %777 = vmatprep.mubr.bf16.mxu0 %v603
      %778 = vmatmul.mubr.bf16.gmra.mxu0 %v383
      %v779 = vpop.f32.mrf.mxu0
      %v780 = vadd.f32 %v683, %v779
      %v781 = vpop.f32.mrf.mxu0
      %v782 = vpop.f32.mrf.mxu0
      %v783 = vadd.f32 %v686, %v782
      %v784 = vpop.f32.mrf.mxu0
      %785 = vmatprep.mubr.bf16.mxu0 %v606
      %786 = vmatmul.mubr.bf16.gmra.mxu0 %v387
      %v787 = vpop.f32.mrf.mxu0
      %v788 = vadd.f32 %v691, %v787
      %v789 = vpop.f32.mrf.mxu0
      %v790 = vpop.f32.mrf.mxu0
      %v791 = vadd.f32 %v694, %v790
      %v792 = vpop.f32.mrf.mxu0
      %793 = vmatprep.mubr.bf16.mxu0 %v609
      %794 = vmatmul.mubr.bf16.gmra.mxu0 %v391
      %v795 = vpop.f32.mrf.mxu0
      %v796 = vadd.f32 %v699, %v795
      %v797 = vpop.f32.mrf.mxu0
      %v798 = vpop.f32.mrf.mxu0
      %v799 = vadd.f32 %v702, %v798
      %v800 = vpop.f32.mrf.mxu0
      %801 = vmatprep.mubr.bf16.mxu0 %v612
      %802 = vmatmul.mubr.bf16.gmra.mxu0 %v395
      %v803 = vpop.f32.mrf.mxu0
      %v804 = vadd.f32 %v707, %v803
      %v805 = vpop.f32.mrf.mxu0
      %v806 = vpop.f32.mrf.mxu0
      %v807 = vadd.f32 %v710, %v806
      %v808 = vpop.f32.mrf.mxu0
      %809 = vmatprep.mubr.bf16.mxu0 %v615
      %810 = vmatmul.mubr.bf16.gmra.mxu0 %v399
      %v811 = vpop.f32.mrf.mxu0
      %v812 = vadd.f32 %v715, %v811
      %v813 = vpop.f32.mrf.mxu0
      %v814 = vpop.f32.mrf.mxu0
      %v815 = vadd.f32 %v718, %v814
      %v816 = vpop.f32.mrf.mxu0
      %817 = vdwg.mxu0
      %v818 = vpack.c.bf16 %v759, %v756
      %v819 = vpack.c.bf16 %v767, %v764
      %v820 = vpack.c.bf16 %v775, %v772
      %v821 = vpack.c.bf16 %v783, %v780
      %v822 = vpack.c.bf16 %v791, %v788
      %v823 = vpack.c.bf16 %v799, %v796
      %v824 = vpack.c.bf16 %v807, %v804
      %v825 = vpack.c.bf16 %v815, %v812
      %v834 = vunpack.c.l.b16 %v818
      %v835 = vunpack.c.h.b16 %v818
      %v836 = vunpack.c.l.b16 %v819
      %v837 = vunpack.c.h.b16 %v819
      %v838 = vunpack.c.l.b16 %v820
      %v839 = vunpack.c.h.b16 %v820
      %v840 = vunpack.c.l.b16 %v821
      %v841 = vunpack.c.h.b16 %v821
      %v842 = vunpack.c.l.b16 %v822
      %v843 = vunpack.c.h.b16 %v822
      %v844 = vunpack.c.l.b16 %v823
      %v845 = vunpack.c.h.b16 %v823
      %v846 = vunpack.c.l.b16 %v824
      %v847 = vunpack.c.h.b16 %v824
      %v848 = vunpack.c.l.b16 %v825
      %v849 = vunpack.c.h.b16 %v825
      %v850 = vpack.c.b16 %v834, %v834
      %v851 = vpack.c.b16 %v835, %v835
      %v852 = vpack.c.b16 %v836, %v836
      %v853 = vpack.c.b16 %v837, %v837
      %v854 = vpack.c.b16 %v838, %v838
      %v855 = vpack.c.b16 %v839, %v839
      %v856 = vpack.c.b16 %v840, %v840
      %v857 = vpack.c.b16 %v841, %v841
      %v858 = vpack.c.b16 %v842, %v842
      %v859 = vpack.c.b16 %v843, %v843
      %v860 = vpack.c.b16 %v844, %v844
      %v861 = vpack.c.b16 %v845, %v845
      %v862 = vpack.c.b16 %v846, %v846
      %v863 = vpack.c.b16 %v847, %v847
      %v864 = vpack.c.b16 %v848, %v848
      %v865 = vpack.c.b16 %v849, %v849
      %vm882 = vcmask 125952
      %883 = vst.msk [vmem:[%s175] sm:$0xf] %vm882, %v850
      %884 = vst.msk [vmem:[%s175 + $0x4] sm:$0xf] %vm882, %v851
      %885 = vst.msk [vmem:[%s175 + $0x8] sm:$0xf] %vm882, %v852
      %886 = vst.msk [vmem:[%s175 + $0xc] sm:$0xf] %vm882, %v853
      %887 = vst.msk [vmem:[%s175 + $0x10] sm:$0xf] %vm882, %v854
      %888 = vst.msk [vmem:[%s175 + $0x14] sm:$0xf] %vm882, %v855
      %889 = vst.msk [vmem:[%s175 + $0x18] sm:$0xf] %vm882, %v856
      %890 = vst.msk [vmem:[%s175 + $0x1c] sm:$0xf] %vm882, %v857
      %891 = vst.msk [vmem:[%s175 + $0x20] sm:$0xf] %vm882, %v858
      %892 = vst.msk [vmem:[%s175 + $0x24] sm:$0xf] %vm882, %v859
      %893 = vst.msk [vmem:[%s175 + $0x28] sm:$0xf] %vm882, %v860
      %894 = vst.msk [vmem:[%s175 + $0x2c] sm:$0xf] %vm882, %v861
      %895 = vst.msk [vmem:[%s175 + $0x30] sm:$0xf] %vm882, %v862
      %896 = vst.msk [vmem:[%s175 + $0x34] sm:$0xf] %vm882, %v863
      %897 = vst.msk [vmem:[%s175 + $0x38] sm:$0xf] %vm882, %v864
      %898 = vst.msk [vmem:[%s175 + $0x3c] sm:$0xf] %vm882, %v865
      %s899 = smul.u32 16, %s14
      %p900 = scmp.lt.s32.totalorder %s899, 31
      %s901 = scalar_select %p900, %s899, 31
      %s902 = smul.addr %s901, 4
      %s903 = scalar_lea.vmem %s3, %s902
      // Predicated region
      $region33: #{tpu_custom_call.1} parent=31 // pred_check
        %p904 = pneg %p100
      $region34: #{tpu_custom_call.1} parent=31 // pred_check_branch
        %906 = sbr.rel (%p904) target = $region36
      $region35: #{tpu_custom_call.1} parent=31 // pred_region
        %s907 = smul.u32 16, %s14
      $region36: #{tpu_custom_call.1} parent=31 // pred_fallthru
        _
    $region32: #{tpu_custom_call.1} parent=5 // pred_fallthru
      _
    %p908 = scmp.le.s32.totalorder 2, %s9
    // Predicated region
    $region37: #{tpu_custom_call.1} parent=5 // pred_check
      %p909 = pneg %p908
    $region38: #{tpu_custom_call.1} parent=5 // pred_check_branch
      %911 = sbr.rel (%p909) target = $region40
    $region39: #{tpu_custom_call.1} parent=5 // pred_region
      %s912 = ssub.s32 %s9, 2
      // Predicated region
      $region41: #{tpu_custom_call.1} parent=39 // pred_check
        %p913 = pneg %p106
      $region42: #{tpu_custom_call.1} parent=39 // pred_check_branch
        %915 = sbr.rel (%p913) target = $region44
      $region43: #{tpu_custom_call.1} parent=39 // pred_region
        %s916 = smul.u32 16, %s15
        %p917 = scmp.lt.s32.totalorder %s916, 31
        %s918 = scalar_select %p917, %s916, 31
        %s919 = smul.addr %s918, 4
        %s920 = scalar_lea.vmem %s3, %s919
      $region44: #{tpu_custom_call.1} parent=39 // pred_fallthru
        _
    $region40: #{tpu_custom_call.1} parent=5 // pred_fallthru
      _
  $region6: #{tpu_custom_call.1} parent=0 // loop_footer
    %s13 = sadd.s32 1, %s9
  $region7: #{tpu_custom_call.1} parent=0 // loop_footer_branch
    %8 = sbr.rel target = $region3
  $region8: #{tpu_custom_call.1} parent=0 // loop_exit
    _

</llo_original>
